<compile_context>
chip_gen: v6e
topology: v6e:2x2x1
jax: 0.10.0
libtpu: 0.0.40
codegen_flags: <defaults>
</compile_context>

<pallas_src>
import functools

import jax
import jax.numpy as jnp
from jax.experimental import pallas as pl
from jax.experimental.pallas import tpu as pltpu


# ---------------------------------------------------------------------------
# helpers
# ---------------------------------------------------------------------------
def _round_up(x: int, m: int) -> int:
    return ((x + m - 1) // m) * m


def _pick_batch_tile(batch: int, width: int, *, target_bytes: int = 2 << 20,
                     max_rows: int = 1024) -> int:
    """Pick a batch tile (multiple of 8 rows) sized for double-buffered VMEM."""
    rows = max(8, min(max_rows, target_bytes // max(1, width * 4)))
    rows = max(8, (rows // 8) * 8)
    # Don't pad tiny batches up to a huge tile.
    rows = min(rows, _round_up(batch, 8))
    return rows


# ---------------------------------------------------------------------------
# Kernel 1 (fused): CrossEntropyLoss(mean) + accuracy count + softmax probs.
#   grid = (num_batch_tiles,)  -- reduction axis, marked "arbitrary".
#   Scalars accumulate in SMEM scratch; written to SMEM outputs on last step.
# ---------------------------------------------------------------------------
def _make_cls_kernel(total_b: int, tile_rows: int):
    inv_b = 1.0 / float(total_b)

    def kernel(logits_ref, labels_ref,            # inputs  (VMEM tiles)
               probs_ref, loss_ref, correct_ref,  # outputs (VMEM tile, SMEM, SMEM)
               loss_sm, corr_sm):                 # SMEM scratch accumulators
        i = pl.program_id(0)

        @pl.when(i == 0)
        def _():
            loss_sm[0] = 0.0
            corr_sm[0] = 0.0

        x = logits_ref[...].astype(jnp.float32)     # [TB, C]
        y = labels_ref[...]                         # [TB, 1] int32
        tb, c = x.shape

        # validity mask for the (possibly ragged, batch-padded) last tile
        row = jax.lax.broadcasted_iota(jnp.int32, (tb, 1), 0) + i * tile_rows
        valid = row < total_b                       # [TB, 1] bool
        valid_f = valid.astype(jnp.float32)

        # column iota computed once, reused for one-hot gather and argmax
        col = jax.lax.broadcasted_iota(jnp.int32, (tb, c), 1)

        # shared row statistics (computed once for CE, accuracy and softmax)
        m = jnp.max(x, axis=-1, keepdims=True)      # [TB, 1]
        z = x - m
        e = jnp.exp(z)
        s = jnp.sum(e, axis=-1, keepdims=True)      # [TB, 1]

        # softmax probabilities (lane-dense full-width store)
        probs_ref[...] = (e * pl.reciprocal(s, approx=False)).astype(probs_ref.dtype)

        # cross-entropy: nll = logsumexp(x) - x[label] = log(s) - z[label]
        lse = jnp.log(s)                            # [TB, 1]
        tgt = jnp.sum(jnp.where(col == y, z, 0.0), axis=-1, keepdims=True)
        nll = lse - tgt                             # [TB, 1]
        loss_sm[0] += jnp.sum(nll * valid_f)

        # accuracy: first-max argmax (torch.argmax tie-break)
        argmax = jnp.min(jnp.where(x == m, col, c), axis=-1, keepdims=True)
        corr_sm[0] += jnp.sum(jnp.where((argmax == y) & valid, 1.0, 0.0))

        @pl.when(i == pl.num_programs(0) - 1)
        def _():
            loss_ref[0, 0] = loss_sm[0] * inv_b     # mean over true batch
            correct_ref[0, 0] = corr_sm[0]

    return kernel


@functools.partial(jax.jit, static_argnames=("tile_rows",))
def _cls_call(logits_p, labels_p, total_b, tile_rows):
    # total_b is baked statically via closure in the wrapper below; here it is
    # only threaded for jit cache keying convenience (ignored).
    del total_b
    return logits_p, labels_p  # placeholder (unused) -- real call is below


def classification_metrics_and_probs(logits, labels, tile_rows=None):
    """logits: [B, C] f32, labels: [B] int32.

    Returns (mean CE loss, #correct, softmax probs [B, C])."""
    B, C = logits.shape
    if tile_rows is None:
        tile_rows = _pick_batch_tile(B, C)
    tile_rows = max(8, (int(tile_rows) // 8) * 8)
    b_pad = _round_up(B, tile_rows)
    grid = b_pad // tile_rows

    logits_p = jnp.pad(logits.astype(jnp.float32), ((0, b_pad - B), (0, 0)))
    labels_p = jnp.pad(labels.reshape(-1, 1).astype(jnp.int32),
                       ((0, b_pad - B), (0, 0)))

    probs, loss, correct = pl.pallas_call(
        _make_cls_kernel(B, tile_rows),
        out_shape=(jax.ShapeDtypeStruct((b_pad, C), jnp.float32),
                   jax.ShapeDtypeStruct((1, 1), jnp.float32),
                   jax.ShapeDtypeStruct((1, 1), jnp.float32)),
        grid_spec=pltpu.PrefetchScalarGridSpec(
            num_scalar_prefetch=0,
            grid=(grid,),
            in_specs=[
                pl.BlockSpec((tile_rows, C), lambda i: (i, 0)),
                pl.BlockSpec((tile_rows, 1), lambda i: (i, 0)),
            ],
            out_specs=(
                pl.BlockSpec((tile_rows, C), lambda i: (i, 0)),
                pl.BlockSpec((1, 1), lambda i: (0, 0), memory_space=pltpu.SMEM),
                pl.BlockSpec((1, 1), lambda i: (0, 0), memory_space=pltpu.SMEM),
            ),
            scratch_shapes=[pltpu.SMEM((1,), jnp.float32),
                            pltpu.SMEM((1,), jnp.float32)],
        ),
        compiler_params=pltpu.CompilerParams(
            dimension_semantics=("arbitrary",)),  # reduction axis (accumulator)
    )(logits_p, labels_p)

    return loss[0, 0], correct[0, 0], probs[:B]


# ---------------------------------------------------------------------------
# Kernel 2: MSELoss (mean reduction) — regression criterion / score path.
#   Same batch-tiled accumulator structure, SMEM scalar output.
# ---------------------------------------------------------------------------
def _make_mse_kernel(total_b: int, total_d: int, tile_rows: int):
    inv_n = 1.0 / float(total_b * total_d)

    def kernel(yhat_ref, y_ref, loss_ref, acc_sm):
        i = pl.program_id(0)

        @pl.when(i == 0)
        def _():
            acc_sm[0] = 0.0

        d = yhat_ref[...].astype(jnp.float32) - y_ref[...].astype(jnp.float32)
        tb, _ = d.shape
        row = jax.lax.broadcasted_iota(jnp.int32, d.shape, 0) + i * tile_rows
        valid = (row < total_b).astype(jnp.float32)
        acc_sm[0] += jnp.sum(d * d * valid)

        @pl.when(i == pl.num_programs(0) - 1)
        def _():
            loss_ref[0, 0] = acc_sm[0] * inv_n

    return kernel


def mse_loss(y_hat, y, tile_rows=None):
    """y_hat: [B, D] f32, y: anything reshapeable to y_hat -> scalar mean MSE."""
    y = y.reshape(y_hat.shape)
    B, D = y_hat.shape
    if tile_rows is None:
        tile_rows = _pick_batch_tile(B, D)
    tile_rows = max(8, (int(tile_rows) // 8) * 8)
    b_pad = _round_up(B, tile_rows)
    grid = b_pad // tile_rows

    yhat_p = jnp.pad(y_hat.astype(jnp.float32), ((0, b_pad - B), (0, 0)))
    y_p = jnp.pad(y.astype(jnp.float32), ((0, b_pad - B), (0, 0)))

    out = pl.pallas_call(
        _make_mse_kernel(B, D, tile_rows),
        out_shape=jax.ShapeDtypeStruct((1, 1), jnp.float32),
        grid_spec=pltpu.PrefetchScalarGridSpec(
            num_scalar_prefetch=0,
            grid=(grid,),
            in_specs=[
                pl.BlockSpec((tile_rows, D), lambda i: (i, 0)),
                pl.BlockSpec((tile_rows, D), lambda i: (i, 0)),
            ],
            out_specs=pl.BlockSpec((1, 1), lambda i: (0, 0),
                                   memory_space=pltpu.SMEM),
            scratch_shapes=[pltpu.SMEM((1,), jnp.float32)],
        ),
        compiler_params=pltpu.CompilerParams(
            dimension_semantics=("arbitrary",)),
    )(yhat_p, y_p)
    return out[0, 0]


# ---------------------------------------------------------------------------
# demo / self-check
# ---------------------------------------------------------------------------
if __name__ == "__main__":
    key = jax.random.PRNGKey(0)
    k1, k2, k3, k4 = jax.random.split(key, 4)

    # lane-dense shapes (last dim 128); B=200 with TB=64 exercises 4 grid
    # steps including a ragged (8-valid-row) last tile.
    B, C, D = 200, 128, 128
    TB = 64

    # classification / single-sentence-autoencoder path
    logits = jax.random.normal(k1, (B, C), dtype=jnp.float32)
    labels = jax.random.randint(k2, (B,), 0, C, dtype=jnp.int32)
    ce, correct, probs = classification_metrics_and_probs(logits, labels,
                                                          tile_rows=TB)

    # regression path
    y_hat = jax.random.normal(k3, (B, D), dtype=jnp.float32)
    y_true = jax.random.normal(k4, (B, D), dtype=jnp.float32)
    mse = mse_loss(y_hat, y_true, tile_rows=TB)

    jax.block_until_ready((ce, correct, probs, mse))

    # pure-JAX references
    ce_ref = jnp.mean(-jax.nn.log_softmax(logits, axis=-1)[jnp.arange(B), labels])
    acc_ref = jnp.sum(jnp.argmax(logits, axis=1) == labels).astype(jnp.float32)
    mse_ref = jnp.mean((y_hat - y_true) ** 2)
    probs_ref = jax.nn.softmax(logits, axis=1)

    assert jnp.allclose(ce, ce_ref, atol=1e-4, rtol=1e-4), (ce, ce_ref)
    assert jnp.allclose(correct, acc_ref), (correct, acc_ref)
    assert jnp.allclose(mse, mse_ref, atol=1e-4, rtol=1e-4), (mse, mse_ref)
    assert jnp.allclose(probs, probs_ref, atol=1e-5, rtol=1e-5)

    print("KERNEL_OK")
</pallas_src>

<mosaic_0001>
module attributes {stable_mosaic.version = 11 : i64} {
  func.func @kernel(%arg0: i32, %arg1: memref<64x128xf32, #tpu.memory_space<vmem>>, %arg2: memref<64x1xi32, #tpu.memory_space<vmem>>, %arg3: memref<64x128xf32, #tpu.memory_space<vmem>>, %arg4: memref<1x1xf32, #tpu.memory_space<smem>>, %arg5: memref<1x1xf32, #tpu.memory_space<smem>>, %arg6: memref<1xf32, #tpu.memory_space<smem>>, %arg7: memref<1xf32, #tpu.memory_space<smem>>) attributes {dimension_semantics = [#tpu.dimension_semantics<arbitrary>], iteration_bounds = array<i64: 4>, scalar_prefetch = 0 : i64, scratch_operands = 2 : i64, tpu.core_type = #tpu.core_type<tc>, window_params = [{transform_indices = @transform_0, window_bounds = array<i64: 64, 128>}, {transform_indices = @transform_1, window_bounds = array<i64: 64, 1>}, {transform_indices = @transform_2, window_bounds = array<i64: 64, 128>}, {transform_indices = @transform_3, window_bounds = array<i64: 1, 1>}, {transform_indices = @transform_4, window_bounds = array<i64: 1, 1>}]} {
    %c0_i32 = arith.constant 0 : i32
    %0 = arith.cmpi eq, %arg0, %c0_i32 : i32
    %1 = arith.extui %0 : i1 to i32
    %c0_i32_0 = arith.constant 0 : i32
    %2 = arith.cmpi ne, %1, %c0_i32_0 : i32
    scf.if %2 {
      %cst_19 = arith.constant 0.000000e+00 : f32
      %c0_20 = arith.constant 0 : index
      %62 = memref.load %arg6[%c0_20] : memref<1xf32, #tpu.memory_space<smem>>
      memref.store %cst_19, %arg6[%c0_20] : memref<1xf32, #tpu.memory_space<smem>>
      %cst_21 = arith.constant 0.000000e+00 : f32
      %c0_22 = arith.constant 0 : index
      %63 = memref.load %arg7[%c0_22] : memref<1xf32, #tpu.memory_space<smem>>
      memref.store %cst_21, %arg7[%c0_22] : memref<1xf32, #tpu.memory_space<smem>>
    } else {
    }
    %c0 = arith.constant 0 : index
    %c0_1 = arith.constant 0 : index
    %3 = vector.load %arg1[%c0, %c0_1] : memref<64x128xf32, #tpu.memory_space<vmem>>, vector<64x128xf32>
    %c0_2 = arith.constant 0 : index
    %c0_3 = arith.constant 0 : index
    %4 = vector.load %arg2[%c0_2, %c0_3] : memref<64x1xi32, #tpu.memory_space<vmem>>, vector<64x1xi32>
    %5 = tpu.iota {dimensions = array<i32: 0>} : vector<64x1xi32>
    %c64_i32 = arith.constant 64 : i32
    %6 = arith.muli %arg0, %c64_i32 : i32
    %7 = vector.broadcast %6 : i32 to vector<64x1xi32>
    %8 = arith.addi %5, %7 : vector<64x1xi32>
    %c200_i32 = arith.constant 200 : i32
    %9 = vector.broadcast %c200_i32 : i32 to vector<64x1xi32>
    %10 = arith.cmpi slt, %8, %9 : vector<64x1xi32>
    %11 = arith.extui %10 : vector<64x1xi1> to vector<64x1xi32>
    %12 = arith.sitofp %11 : vector<64x1xi32> to vector<64x1xf32>
    %13 = tpu.iota {dimensions = array<i32: 1>} : vector<64x128xi32>
    %cst = arith.constant dense<0xFF800000> : vector<64xf32>
    %14 = vector.multi_reduction <maximumf>, %3, %cst [1] : vector<64x128xf32> to vector<64xf32>
    %15 = vector.shape_cast %14 : vector<64xf32> to vector<64x1xf32>
    %16 = vector.broadcast %15 : vector<64x1xf32> to vector<64x128xf32>
    %17 = arith.subf %3, %16 : vector<64x128xf32>
    %18 = math.exp %17 : vector<64x128xf32>
    %cst_4 = arith.constant dense<0.000000e+00> : vector<64xf32>
    %19 = vector.multi_reduction <add>, %18, %cst_4 [1] : vector<64x128xf32> to vector<64xf32>
    %20 = vector.shape_cast %19 : vector<64xf32> to vector<64x1xf32>
    %21 = tpu.reciprocal %20 : vector<64x1xf32> -> vector<64x1xf32>
    %22 = vector.broadcast %21 : vector<64x1xf32> to vector<64x128xf32>
    %23 = arith.mulf %18, %22 : vector<64x128xf32>
    %c0_5 = arith.constant 0 : index
    %c0_6 = arith.constant 0 : index
    %24 = vector.load %arg3[%c0_5, %c0_6] : memref<64x128xf32, #tpu.memory_space<vmem>>, vector<64x128xf32>
    tpu.vector_store %arg3[%c0_5, %c0_6], %23 {strides = array<i32>} : memref<64x128xf32, #tpu.memory_space<vmem>>, vector<64x128xf32>,
    %25 = math.log %20 : vector<64x1xf32>
    %26 = vector.broadcast %4 : vector<64x1xi32> to vector<64x128xi32>
    %27 = arith.cmpi eq, %13, %26 : vector<64x128xi32>
    %cst_7 = arith.constant 0.000000e+00 : f32
    %28 = vector.broadcast %cst_7 : f32 to vector<64x128xf32>
    %29 = arith.select %27, %17, %28 : vector<64x128xi1>, vector<64x128xf32>
    %cst_8 = arith.constant dense<0.000000e+00> : vector<64xf32>
    %30 = vector.multi_reduction <add>, %29, %cst_8 [1] : vector<64x128xf32> to vector<64xf32>
    %31 = vector.shape_cast %30 : vector<64xf32> to vector<64x1xf32>
    %32 = arith.subf %25, %31 : vector<64x1xf32>
    %c0_9 = arith.constant 0 : index
    %33 = memref.load %arg6[%c0_9] : memref<1xf32, #tpu.memory_space<smem>>
    %34 = arith.mulf %32, %12 : vector<64x1xf32>
    %35 = vector.shape_cast %34 : vector<64x1xf32> to vector<1x64x1xf32>
    %cst_10 = arith.constant dense<0.000000e+00> : vector<1xf32>
    %36 = vector.multi_reduction <add>, %35, %cst_10 [1, 2] : vector<1x64x1xf32> to vector<1xf32>
    %37 = vector.shape_cast %36 : vector<1xf32> to vector<1x1x1xf32>
    %38 = vector.extract %37[0, 0, 0] : f32 from vector<1x1x1xf32>
    %39 = arith.addf %33, %38 : f32
    %c0_11 = arith.constant 0 : index
    %40 = memref.load %arg6[%c0_11] : memref<1xf32, #tpu.memory_space<smem>>
    memref.store %39, %arg6[%c0_11] : memref<1xf32, #tpu.memory_space<smem>>
    %41 = vector.broadcast %15 : vector<64x1xf32> to vector<64x128xf32>
    %42 = arith.cmpf oeq, %3, %41 : vector<64x128xf32>
    %c128_i32 = arith.constant 128 : i32
    %43 = vector.broadcast %c128_i32 : i32 to vector<64x128xi32>
    %44 = arith.select %42, %13, %43 : vector<64x128xi1>, vector<64x128xi32>
    %cst_12 = arith.constant dense<2147483647> : vector<64xi32>
    %45 = vector.multi_reduction <minsi>, %44, %cst_12 [1] : vector<64x128xi32> to vector<64xi32>
    %46 = vector.shape_cast %45 : vector<64xi32> to vector<64x1xi32>
    %c0_13 = arith.constant 0 : index
    %47 = memref.load %arg7[%c0_13] : memref<1xf32, #tpu.memory_space<smem>>
    %48 = arith.cmpi eq, %46, %4 : vector<64x1xi32>
    %49 = arith.andi %48, %10 : vector<64x1xi1>
    %cst_14 = arith.constant 1.000000e+00 : f32
    %cst_15 = arith.constant 0.000000e+00 : f32
    %50 = vector.broadcast %cst_14 : f32 to vector<64x1xf32>
    %51 = vector.broadcast %cst_15 : f32 to vector<64x1xf32>
    %52 = arith.select %49, %50, %51 : vector<64x1xi1>, vector<64x1xf32>
    %53 = vector.shape_cast %52 : vector<64x1xf32> to vector<1x64x1xf32>
    %cst_16 = arith.constant dense<0.000000e+00> : vector<1xf32>
    %54 = vector.multi_reduction <add>, %53, %cst_16 [1, 2] : vector<1x64x1xf32> to vector<1xf32>
    %55 = vector.shape_cast %54 : vector<1xf32> to vector<1x1x1xf32>
    %56 = vector.extract %55[0, 0, 0] : f32 from vector<1x1x1xf32>
    %57 = arith.addf %47, %56 : f32
    %c0_17 = arith.constant 0 : index
    %58 = memref.load %arg7[%c0_17] : memref<1xf32, #tpu.memory_space<smem>>
    memref.store %57, %arg7[%c0_17] : memref<1xf32, #tpu.memory_space<smem>>
    %c3_i32 = arith.constant 3 : i32
    %59 = arith.cmpi eq, %arg0, %c3_i32 : i32
    %60 = arith.extui %59 : i1 to i32
    %c0_i32_18 = arith.constant 0 : i32
    %61 = arith.cmpi ne, %60, %c0_i32_18 : i32
    scf.if %61 {
      %c0_19 = arith.constant 0 : index
      %62 = memref.load %arg6[%c0_19] : memref<1xf32, #tpu.memory_space<smem>>
      %cst_20 = arith.constant 5.000000e-03 : f32
      %63 = arith.mulf %62, %cst_20 : f32
      %c0_21 = arith.constant 0 : index
      %c0_22 = arith.constant 0 : index
      %64 = memref.load %arg4[%c0_21, %c0_22] : memref<1x1xf32, #tpu.memory_space<smem>>
      memref.store %63, %arg4[%c0_21, %c0_22] : memref<1x1xf32, #tpu.memory_space<smem>>
      %c0_23 = arith.constant 0 : index
      %65 = memref.load %arg7[%c0_23] : memref<1xf32, #tpu.memory_space<smem>>
      %c0_24 = arith.constant 0 : index
      %c0_25 = arith.constant 0 : index
      %66 = memref.load %arg5[%c0_24, %c0_25] : memref<1x1xf32, #tpu.memory_space<smem>>
      memref.store %65, %arg5[%c0_24, %c0_25] : memref<1x1xf32, #tpu.memory_space<smem>>
    } else {
    }
    return
  }
  func.func @transform_0(%arg0: i32) -> (i32, i32) {
    %c0_i32 = arith.constant 0 : i32
    %c0_i32_0 = arith.constant 0 : i32
    return %arg0, %c0_i32 : i32, i32
  }
  func.func @transform_1(%arg0: i32) -> (i32, i32) {
    %c0_i32 = arith.constant 0 : i32
    %c0_i32_0 = arith.constant 0 : i32
    return %arg0, %c0_i32 : i32, i32
  }
  func.func @transform_2(%arg0: i32) -> (i32, i32) {
    %c0_i32 = arith.constant 0 : i32
    %c0_i32_0 = arith.constant 0 : i32
    return %arg0, %c0_i32 : i32, i32
  }
  func.func @transform_3(%arg0: i32) -> (i32, i32) {
    %c0_i32 = arith.constant 0 : i32
    %c0_i32_0 = arith.constant 0 : i32
    %c0_i32_1 = arith.constant 0 : i32
    return %c0_i32, %c0_i32_0 : i32, i32
  }
  func.func @transform_4(%arg0: i32) -> (i32, i32) {
    %c0_i32 = arith.constant 0 : i32
    %c0_i32_0 = arith.constant 0 : i32
    %c0_i32_1 = arith.constant 0 : i32
    return %c0_i32, %c0_i32_0 : i32, i32
  }
}

</mosaic_0001>

<llo_original>
// kernel: tpu_custom_call.1
$region0: #{tpu_custom_call.1}
  #allocation0 [shape = 'u32[]', space=smem, size = 0x4, offset = 0x4, fixed_abs, tag = 'smem constant byte address 0x4 - core index']
  #allocation1 [shape = 'u32[144,128]{1,0:T(1,128)}', space=vmem, size = 0x12000, scoped, tag = 'internal scratch']
  #allocation2 [shape = 'f32[1]{0:T(128)}', space=smem, size = 0x200, scoped, tag = 'scratch operand']
  #allocation3 [shape = 'f32[1]{0:T(128)}', space=smem, size = 0x200, scoped, tag = 'scratch operand']
  %s0 = inlined_call_operand.vmem [shape: f32[256,128], index: 0, kind: input, shape index: {}]
  %s1 = inlined_call_operand.vmem [shape: s32[256,1], index: 1, kind: input, shape index: {}]
  %s2 = inlined_call_operand.hbm [shape: f32[256,128], index: 2, kind: output, shape index: {0}]
  %s3 = inlined_call_operand.hbm [shape: f32[1,1], index: 3, kind: output, shape index: {1}]
  %s4 = inlined_call_operand.hbm [shape: f32[1,1], index: 4, kind: output, shape index: {2}]
  %5 = xla_tuple %s2, %s3, %s4
  %s6 = sld [smem:[#allocation0]]
  $region65: #{tpu_custom_call.1} parent=0
    _
  %s8 = ssub.s32 1, %s6
  %s9 = scalar_select 0, %s8, %s6
  $region1: #{tpu_custom_call.1} parent=0
    #allocation4 [shape = 'u8[65536]{0}', space=vmem, size = 0x10000, scoped, tag = 'output window, operand 0']
    #allocation5 [shape = 's32[2]{0}', space=sflag, size = 0x8, scoped, tag = 'scoped memory for tpu_custom_call.1']
    #allocation6 [shape = 's32[2]{0}', space=sflag, size = 0x8, scoped, tag = 'scoped memory for tpu_custom_call.1']
    #allocation7 [shape = 'u8[512]{0}', space=smem, size = 0x200, scoped, tag = 'output window, operand 1, single buffered']
    #allocation8 [shape = 'u8[512]{0}', space=smem, size = 0x200, scoped, tag = 'output window, operand 2, single buffered']
    #allocation9 [shape = 's32[1]{0}', space=sflag, size = 0x4, scoped, tag = 'scoped memory for tpu_custom_call.1']
    %10 = vsyncpa [#allocation5], 0
    %s11 = scalar_lea.sflag [#allocation5], 1
    %12 = vsyncpa %s11, 0
    %13 = vsyncpa [#allocation6], 0
    %14 = vsyncpa [#allocation9], 0
    loop: start=0, step=1, limit=6
    $region2: #{tpu_custom_call.1} parent=1 // loop_pre_header
      _
    $region3: #{tpu_custom_call.1} parent=1 // loop_header
      %s16 = sphi 0, %s20
      %p17 = scmp.ge.s32.totalorder %s16, 6
      %s26 = sphi 0, %s28
      %s29 = sphi 0, %s26
      %s30 = sphi 0, %s29
      %s46 = sphi 0, %s30
      %s52 = sphi 0, %s54
      %s55 = sphi 0, %s52
      %s56 = sphi 0, %s55
      %s72 = sphi 0, %s56
      %s78 = sphi 0, %s80
      %s81 = sphi 0, %s78
      %s82 = sphi 0, %s81
      %s98 = sphi 0, %s82
      %s102 = sphi 0, %s102
      %s104 = sphi 0, %s102
      %s105 = sphi 0, %s104
      %s119 = sphi 0, %s105
      %s123 = sphi 0, %s123
      %s125 = sphi 0, %s123
      %s126 = sphi 0, %s125
      %s140 = sphi 0, %s126
    $region4: #{tpu_custom_call.1} parent=1 // loop_header_branch
      %19 = sbr.rel (%p17) target = $region8
    $region5: #{tpu_custom_call.1} parent=1 // loop_body
      %s21 = ssub.s32 %s16, 1
      %s22 = ssub.s32 %s16, 2
      %s23 = sadd.s32 %s16, 1
      %s24 = ssub.s32 %s16, %s23
      %p25 = scmp.eq.s32.totalorder %s24, 0
      %s27 = sadd.s32 %s26, 1
      %s28 = scalar_select %p25, %s26, %s27
      %p31 = pneg %p25
      %p32 = scmp.eq.s32.totalorder %s16, 3
      %p33 = por %p31, %p32
      %p34 = scmp.ne.s32.totalorder %s26, %s29
      %p35 = scmp.eq.s32.totalorder %s16, 0
      %p36 = por %p34, %p35
      %p37 = scmp.ne.s32.totalorder %s26, %s29
      %p38 = scmp.eq.s32.totalorder %s21, 3
      %p39 = por %p37, %p38
      %p40 = scmp.ne.s32.totalorder %s29, %s30
      %p41 = scmp.eq.s32.totalorder %s21, 0
      %p42 = por %p40, %p41
      %p43 = scmp.ne.s32.totalorder %s29, %s30
      %p44 = scmp.eq.s32.totalorder %s22, 3
      %p45 = por %p43, %p44
      %p47 = scmp.ne.s32.totalorder %s30, %s46
      %p48 = scmp.eq.s32.totalorder %s22, 0
      %p49 = por %p47, %p48
      %s50 = ssub.s32 %s16, %s23
      %p51 = scmp.eq.s32.totalorder %s50, 0
      %s53 = sadd.s32 %s52, 1
      %s54 = scalar_select %p51, %s52, %s53
      %p57 = pneg %p51
      %p58 = scmp.eq.s32.totalorder %s16, 3
      %p59 = por %p57, %p58
      %p60 = scmp.ne.s32.totalorder %s52, %s55
      %p61 = scmp.eq.s32.totalorder %s16, 0
      %p62 = por %p60, %p61
      %p63 = scmp.ne.s32.totalorder %s52, %s55
      %p64 = scmp.eq.s32.totalorder %s21, 3
      %p65 = por %p63, %p64
      %p66 = scmp.ne.s32.totalorder %s55, %s56
      %p67 = scmp.eq.s32.totalorder %s21, 0
      %p68 = por %p66, %p67
      %p69 = scmp.ne.s32.totalorder %s55, %s56
      %p70 = scmp.eq.s32.totalorder %s22, 3
      %p71 = por %p69, %p70
      %p73 = scmp.ne.s32.totalorder %s56, %s72
      %p74 = scmp.eq.s32.totalorder %s22, 0
      %p75 = por %p73, %p74
      %s76 = ssub.s32 %s16, %s23
      %p77 = scmp.eq.s32.totalorder %s76, 0
      %s79 = sadd.s32 %s78, 1
      %s80 = scalar_select %p77, %s78, %s79
      %p83 = pneg %p77
      %p84 = scmp.eq.s32.totalorder %s16, 3
      %p85 = por %p83, %p84
      %p86 = scmp.ne.s32.totalorder %s78, %s81
      %p87 = scmp.eq.s32.totalorder %s16, 0
      %p88 = por %p86, %p87
      %p89 = scmp.ne.s32.totalorder %s78, %s81
      %p90 = scmp.eq.s32.totalorder %s21, 3
      %p91 = por %p89, %p90
      %p92 = scmp.ne.s32.totalorder %s81, %s82
      %p93 = scmp.eq.s32.totalorder %s21, 0
      %p94 = por %p92, %p93
      %p95 = scmp.ne.s32.totalorder %s81, %s82
      %p96 = scmp.eq.s32.totalorder %s22, 3
      %p97 = por %p95, %p96
      %p99 = scmp.ne.s32.totalorder %s82, %s98
      %p100 = scmp.eq.s32.totalorder %s22, 0
      %p101 = por %p99, %p100
      %s103 = sadd.s32 %s102, 1
      %p106 = scmp.eq.s32.totalorder %s16, 3
      %p107 = scmp.ne.s32.totalorder %s102, %s104
      %p108 = scmp.eq.s32.totalorder %s16, 0
      %p109 = por %p107, %p108
      %p110 = scmp.ne.s32.totalorder %s102, %s104
      %p111 = scmp.eq.s32.totalorder %s21, 3
      %p112 = por %p110, %p111
      %p113 = scmp.ne.s32.totalorder %s104, %s105
      %p114 = scmp.eq.s32.totalorder %s21, 0
      %p115 = por %p113, %p114
      %p116 = scmp.ne.s32.totalorder %s104, %s105
      %p117 = scmp.eq.s32.totalorder %s22, 3
      %p118 = por %p116, %p117
      %p120 = scmp.ne.s32.totalorder %s105, %s119
      %p121 = scmp.eq.s32.totalorder %s22, 0
      %p122 = por %p120, %p121
      %s124 = sadd.s32 %s123, 1
      %p127 = scmp.eq.s32.totalorder %s16, 3
      %p128 = scmp.ne.s32.totalorder %s123, %s125
      %p129 = scmp.eq.s32.totalorder %s16, 0
      %p130 = por %p128, %p129
      %p131 = scmp.ne.s32.totalorder %s123, %s125
      %p132 = scmp.eq.s32.totalorder %s21, 3
      %p133 = por %p131, %p132
      %p134 = scmp.ne.s32.totalorder %s125, %s126
      %p135 = scmp.eq.s32.totalorder %s21, 0
      %p136 = por %p134, %p135
      %p137 = scmp.ne.s32.totalorder %s125, %s126
      %p138 = scmp.eq.s32.totalorder %s22, 3
      %p139 = por %p137, %p138
      %p141 = scmp.ne.s32.totalorder %s126, %s140
      %p142 = scmp.eq.s32.totalorder %s22, 0
      %p143 = por %p141, %p142
      %p144 = scmp.le.s32.totalorder 1, %s16
      %p145 = scmp.lt.s32.totalorder %s16, 5
      %p146 = pnand %p144, %p145
      %p147 = pneg %p146
      // Predicated region
      $region9: #{tpu_custom_call.1} parent=5 // pred_check
        _
      $region10: #{tpu_custom_call.1} parent=5 // pred_check_branch
        %149 = sbr.rel (%p146) target = $region12
      $region11: #{tpu_custom_call.1} parent=5 // pred_region
        %s150 = ssub.s32 %s16, 1
      $region12: #{tpu_custom_call.1} parent=5 // pred_fallthru
        _
      %p151 = scmp.lt.s32.totalorder %s16, 4
      // Predicated region
      $region13: #{tpu_custom_call.1} parent=5 // pred_check
        %p152 = pneg %p151
      $region14: #{tpu_custom_call.1} parent=5 // pred_check_branch
        %154 = sbr.rel (%p152) target = $region16
      $region15: #{tpu_custom_call.1} parent=5 // pred_region
        // Predicated region
        $region17: #{tpu_custom_call.1} parent=15 // pred_check
          %p155 = pneg %p36
        $region18: #{tpu_custom_call.1} parent=15 // pred_check_branch
          %157 = sbr.rel (%p155) target = $region20
        $region19: #{tpu_custom_call.1} parent=15 // pred_region
          %s158 = smul.u32 8, %s16
          %p159 = scmp.lt.s32.totalorder %s158, 31
          %s160 = scalar_select %p159, %s158, 31
          %s161 = smul.addr %s160, 8
          %s162 = scalar_lea.vmem %s0, %s161
          %s163 = smul.u32 8, %s16
        $region20: #{tpu_custom_call.1} parent=15 // pred_fallthru
          _
        // Predicated region
        $region21: #{tpu_custom_call.1} parent=15 // pred_check
          %p164 = pneg %p62
        $region22: #{tpu_custom_call.1} parent=15 // pred_check_branch
          %166 = sbr.rel (%p164) target = $region24
        $region23: #{tpu_custom_call.1} parent=15 // pred_region
          %s167 = smul.u32 8, %s16
          %p168 = scmp.lt.s32.totalorder %s167, 31
          %s169 = scalar_select %p168, %s167, 31
          %s170 = smul.addr %s169, 8
          %s171 = scalar_lea.vmem %s1, %s170
          %s172 = smul.u32 8, %s16
        $region24: #{tpu_custom_call.1} parent=15 // pred_fallthru
          _
      $region16: #{tpu_custom_call.1} parent=5 // pred_fallthru
        _
      %p173 = scmp.le.s32.totalorder 1, %s16
      %p174 = scmp.lt.s32.totalorder %s16, 5
      %p175 = pnand %p173, %p174
      %p176 = pneg %p175
      // Predicated region
      $region25: #{tpu_custom_call.1} parent=5 // pred_check
        _
      $region26: #{tpu_custom_call.1} parent=5 // pred_check_branch
        %178 = sbr.rel (%p175) target = $region28
      $region27: #{tpu_custom_call.1} parent=5 // pred_region
        %s179 = ssub.s32 %s16, 1
        %s180 = smul.u32 8, %s21
        %p181 = scmp.lt.s32.totalorder %s180, 31
        %s182 = scalar_select %p181, %s180, 31
        %s183 = smul.addr %s182, 8
        %s184 = scalar_lea.vmem %s0, %s183
        %p185 = pneg %p42
        %p186 = pneg %p39
        %s187 = smul.u32 8, %s21
        %p188 = scmp.lt.s32.totalorder %s187, 31
        %s189 = scalar_select %p188, %s187, 31
        %s190 = smul.addr %s189, 8
        %s191 = scalar_lea.vmem %s1, %s190
        %p192 = pneg %p68
        %p193 = pneg %p65
        %p194 = pneg %p94
        %p195 = pneg %p91
        %s196 = sand.u32 %s81, 1
        %s197 = scalar_lea.sflag [#allocation5], %s196
        %s198 = sand.u32 %s81, 1
        %s199 = smul.addr %s198, 64
        %s200 = scalar_lea.vmem [#allocation4], %s199
        %p201 = pneg %p115
        %p202 = pneg %p112
        %p203 = pneg %p136
        %p204 = pneg %p133
        %s205 = smul.u32 8, %s21
        %p206 = scmp.lt.s32.totalorder %s205, 31
        %s207 = scalar_select %p206, %s205, 31
        %s208 = smul.addr %s207, 8
        %s209 = scalar_lea.vmem %s0, %s208
        %s210 = smul.u32 8, %s21
        %s211 = smul.u32 8, %s21
        %p212 = scmp.lt.s32.totalorder %s211, 31
        %s213 = scalar_select %p212, %s211, 31
        %s214 = smul.addr %s213, 8
        %s215 = scalar_lea.vmem %s1, %s214
        %s216 = smul.u32 8, %s21
        %s217 = smul.u32 8, %s21
        %p218 = scmp.eq.s32.totalorder %s21, 0
        // Predicated region
        $region29: #{tpu_custom_call.1} parent=27 // pred_check
          %p219 = pneg %p218
        $region30: #{tpu_custom_call.1} parent=27 // pred_check_branch
          %221 = sbr.rel (%p219) target = $region32
        $region31: #{tpu_custom_call.1} parent=27 // pred_region
          %s222 = scalar_lea.smem [#allocation2], 0
          %223 = sst [smem:[%s222]] 0.0
          %s224 = scalar_lea.smem [#allocation3], 0
          %225 = sst [smem:[%s224]] 0.0
        $region32: #{tpu_custom_call.1} parent=27 // pred_fallthru
          _
        %v226 = vld [vmem:[%s209] sm:$0xff]
        %v227 = vld [vmem:[%s209 + $0x8] sm:$0xff]
        %v228 = vld [vmem:[%s209 + $0x10] sm:$0xff]
        %v229 = vld [vmem:[%s209 + $0x18] sm:$0xff]
        %v230 = vld [vmem:[%s209 + $0x20] sm:$0xff]
        %v231 = vld [vmem:[%s209 + $0x28] sm:$0xff]
        %v232 = vld [vmem:[%s209 + $0x30] sm:$0xff]
        %v233 = vld [vmem:[%s209 + $0x38] sm:$0xff]
        %v234 = vld [vmem:[%s215] sm:$0xff]
        %v235 = vld [vmem:[%s215 + $0x8] sm:$0xff]
        %v236 = vld [vmem:[%s215 + $0x10] sm:$0xff]
        %v237 = vld [vmem:[%s215 + $0x18] sm:$0xff]
        %v238 = vld [vmem:[%s215 + $0x20] sm:$0xff]
        %v239 = vld [vmem:[%s215 + $0x28] sm:$0xff]
        %v240 = vld [vmem:[%s215 + $0x30] sm:$0xff]
        %v241 = vld [vmem:[%s215 + $0x38] sm:$0xff]
        %v242 = vlaneseq
        %v243 = vshrl.u32 %v242, 7
        %v244 = vadd.s32 %v243, 8
        %v245 = vadd.s32 %v243, 16
        %v246 = vadd.s32 %v243, 24
        %v247 = vadd.s32 %v243, 32
        %v248 = vadd.s32 %v243, 40
        %v249 = vadd.s32 %v243, 48
        %v250 = vadd.s32 %v243, 56
        %s251 = smul.u32 %s21, 64
        %v252 = vstv %s251
        %v253 = vadd.s32 %v243, %v252
        %v254 = vadd.s32 %v244, %v252
        %v255 = vadd.s32 %v245, %v252
        %v256 = vadd.s32 %v246, %v252
        %v257 = vadd.s32 %v247, %v252
        %v258 = vadd.s32 %v248, %v252
        %v259 = vadd.s32 %v249, %v252
        %v260 = vadd.s32 %v250, %v252
        %vm261 = vcmp.lt.s32.totalorder %v253, 200
        %vm262 = vcmp.lt.s32.totalorder %v254, 200
        %vm263 = vcmp.lt.s32.totalorder %v255, 200
        %vm264 = vcmp.lt.s32.totalorder %v256, 200
        %vm265 = vcmp.lt.s32.totalorder %v257, 200
        %vm266 = vcmp.lt.s32.totalorder %v258, 200
        %vm267 = vcmp.lt.s32.totalorder %v259, 200
        %vm268 = vcmp.lt.s32.totalorder %v260, 200
        %v269 = vsel %vm261, 1, 0
        %v270 = vsel %vm262, 1, 0
        %v271 = vsel %vm263, 1, 0
        %v272 = vsel %vm264, 1, 0
        %v273 = vsel %vm265, 1, 0
        %v274 = vsel %vm266, 1, 0
        %v275 = vsel %vm267, 1, 0
        %v276 = vsel %vm268, 1, 0
        %v277 = vcvt.s32.f32 %v269
        %v278 = vcvt.s32.f32 %v270
        %v279 = vcvt.s32.f32 %v271
        %v280 = vcvt.s32.f32 %v272
        %v281 = vcvt.s32.f32 %v273
        %v282 = vcvt.s32.f32 %v274
        %v283 = vcvt.s32.f32 %v275
        %v284 = vcvt.s32.f32 %v276
        %v285 = vlaneseq
        %v286 = vand.u32 %v285, 127
        %287 = vmax.xlane.f32.xlu0 %v226
        %v288 = vpop.xlane.xlu0 %287
        %289 = vmax.xlane.f32.xlu0 %v227
        %v290 = vpop.xlane.xlu0 %289
        %291 = vmax.xlane.f32.xlu0 %v228
        %v292 = vpop.xlane.xlu0 %291
        %293 = vmax.xlane.f32.xlu0 %v229
        %v294 = vpop.xlane.xlu0 %293
        %295 = vmax.xlane.f32.xlu0 %v230
        %v296 = vpop.xlane.xlu0 %295
        %297 = vmax.xlane.f32.xlu0 %v231
        %v298 = vpop.xlane.xlu0 %297
        %299 = vmax.xlane.f32.xlu0 %v232
        %v300 = vpop.xlane.xlu0 %299
        %301 = vmax.xlane.f32.xlu0 %v233
        %v302 = vpop.xlane.xlu0 %301
        %v303 = vsub.f32 %v226, %v288
        %v304 = vsub.f32 %v227, %v290
        %v305 = vsub.f32 %v228, %v292
        %v306 = vsub.f32 %v229, %v294
        %v307 = vsub.f32 %v230, %v296
        %v308 = vsub.f32 %v231, %v298
        %v309 = vsub.f32 %v232, %v300
        %v310 = vsub.f32 %v233, %v302
        %v311 = vmul.f32 %v303, 1.442695
        %v312 = vpow.pop %v311
        %v313 = vmul.f32 %v304, 1.442695
        %v314 = vpow.pop %v313
        %v315 = vmul.f32 %v305, 1.442695
        %v316 = vpow.pop %v315
        %v317 = vmul.f32 %v306, 1.442695
        %v318 = vpow.pop %v317
        %v319 = vmul.f32 %v307, 1.442695
        %v320 = vpow.pop %v319
        %v321 = vmul.f32 %v308, 1.442695
        %v322 = vpow.pop %v321
        %v323 = vmul.f32 %v309, 1.442695
        %v324 = vpow.pop %v323
        %v325 = vmul.f32 %v310, 1.442695
        %v326 = vpow.pop %v325
        %327 = vadd.xlane.f32.xlu0 %v312
        %v328 = vpop.xlane.xlu0 %327
        %329 = vadd.xlane.f32.xlu0 %v314
        %v330 = vpop.xlane.xlu0 %329
        %331 = vadd.xlane.f32.xlu0 %v316
        %v332 = vpop.xlane.xlu0 %331
        %333 = vadd.xlane.f32.xlu0 %v318
        %v334 = vpop.xlane.xlu0 %333
        %335 = vadd.xlane.f32.xlu0 %v320
        %v336 = vpop.xlane.xlu0 %335
        %337 = vadd.xlane.f32.xlu0 %v322
        %v338 = vpop.xlane.xlu0 %337
        %339 = vadd.xlane.f32.xlu0 %v324
        %v340 = vpop.xlane.xlu0 %339
        %341 = vadd.xlane.f32.xlu0 %v326
        %v342 = vpop.xlane.xlu0 %341
        %v343 = vrcp.pop %v328
        %v344 = vrcp.pop %v330
        %v345 = vrcp.pop %v332
        %v346 = vrcp.pop %v334
        %v347 = vrcp.pop %v336
        %v348 = vrcp.pop %v338
        %v349 = vrcp.pop %v340
        %v350 = vrcp.pop %v342
        %v351 = vmul.f32 %v312, %v343
        %v352 = vmul.f32 %v314, %v344
        %v353 = vmul.f32 %v316, %v345
        %v354 = vmul.f32 %v318, %v346
        %v355 = vmul.f32 %v320, %v347
        %v356 = vmul.f32 %v322, %v348
        %v357 = vmul.f32 %v324, %v349
        %v358 = vmul.f32 %v326, %v350
        %359 = vst [vmem:[%s200] sm:$0xff] %v351
        %360 = vst [vmem:[%s200 + $0x8] sm:$0xff] %v352
        %361 = vst [vmem:[%s200 + $0x10] sm:$0xff] %v353
        %362 = vst [vmem:[%s200 + $0x18] sm:$0xff] %v354
        %363 = vst [vmem:[%s200 + $0x20] sm:$0xff] %v355
        %364 = vst [vmem:[%s200 + $0x28] sm:$0xff] %v356
        %365 = vst [vmem:[%s200 + $0x30] sm:$0xff] %v357
        %366 = vst [vmem:[%s200 + $0x38] sm:$0xff] %v358
        %v367 = vlog2.pop %v328
        %v368 = vmul.f32 %v367, 0.6931472
        %v369 = vlog2.pop %v330
        %v370 = vmul.f32 %v369, 0.6931472
        %v371 = vlog2.pop %v332
        %v372 = vmul.f32 %v371, 0.6931472
        %v373 = vlog2.pop %v334
        %v374 = vmul.f32 %v373, 0.6931472
        %v375 = vlog2.pop %v336
        %v376 = vmul.f32 %v375, 0.6931472
        %v377 = vlog2.pop %v338
        %v378 = vmul.f32 %v377, 0.6931472
        %v379 = vlog2.pop %v340
        %v380 = vmul.f32 %v379, 0.6931472
        %v381 = vlog2.pop %v342
        %v382 = vmul.f32 %v381, 0.6931472
        %383 = vset.pattern.permute.xlu0 0
        %384 = vperm.xlu0 %383, %v234
        %v385 = vpop.permute.xlu0 %384
        %386 = vset.pattern.permute.xlu0 0
        %387 = vperm.xlu0 %386, %v235
        %v388 = vpop.permute.xlu0 %387
        %389 = vset.pattern.permute.xlu0 0
        %390 = vperm.xlu0 %389, %v236
        %v391 = vpop.permute.xlu0 %390
        %392 = vset.pattern.permute.xlu0 0
        %393 = vperm.xlu0 %392, %v237
        %v394 = vpop.permute.xlu0 %393
        %395 = vset.pattern.permute.xlu0 0
        %396 = vperm.xlu0 %395, %v238
        %v397 = vpop.permute.xlu0 %396
        %398 = vset.pattern.permute.xlu0 0
        %399 = vperm.xlu0 %398, %v239
        %v400 = vpop.permute.xlu0 %399
        %401 = vset.pattern.permute.xlu0 0
        %402 = vperm.xlu0 %401, %v240
        %v403 = vpop.permute.xlu0 %402
        %404 = vset.pattern.permute.xlu0 0
        %405 = vperm.xlu0 %404, %v241
        %v406 = vpop.permute.xlu0 %405
        %vm407 = vcmp.eq.s32.totalorder %v286, %v385
        %vm408 = vcmp.eq.s32.totalorder %v286, %v388
        %vm409 = vcmp.eq.s32.totalorder %v286, %v391
        %vm410 = vcmp.eq.s32.totalorder %v286, %v394
        %vm411 = vcmp.eq.s32.totalorder %v286, %v397
        %vm412 = vcmp.eq.s32.totalorder %v286, %v400
        %vm413 = vcmp.eq.s32.totalorder %v286, %v403
        %vm414 = vcmp.eq.s32.totalorder %v286, %v406
        %v415 = vsel %vm407, %v303, 0.0
        %v416 = vsel %vm408, %v304, 0.0
        %v417 = vsel %vm409, %v305, 0.0
        %v418 = vsel %vm410, %v306, 0.0
        %v419 = vsel %vm411, %v307, 0.0
        %v420 = vsel %vm412, %v308, 0.0
        %v421 = vsel %vm413, %v309, 0.0
        %v422 = vsel %vm414, %v310, 0.0
        %423 = vadd.xlane.f32.xlu0 %v415
        %v424 = vpop.xlane.xlu0 %423
        %425 = vadd.xlane.f32.xlu0 %v416
        %v426 = vpop.xlane.xlu0 %425
        %427 = vadd.xlane.f32.xlu0 %v417
        %v428 = vpop.xlane.xlu0 %427
        %429 = vadd.xlane.f32.xlu0 %v418
        %v430 = vpop.xlane.xlu0 %429
        %431 = vadd.xlane.f32.xlu0 %v419
        %v432 = vpop.xlane.xlu0 %431
        %433 = vadd.xlane.f32.xlu0 %v420
        %v434 = vpop.xlane.xlu0 %433
        %435 = vadd.xlane.f32.xlu0 %v421
        %v436 = vpop.xlane.xlu0 %435
        %437 = vadd.xlane.f32.xlu0 %v422
        %v438 = vpop.xlane.xlu0 %437
        %v439 = vsub.f32 %v368, %v424
        %v440 = vsub.f32 %v370, %v426
        %v441 = vsub.f32 %v372, %v428
        %v442 = vsub.f32 %v374, %v430
        %v443 = vsub.f32 %v376, %v432
        %v444 = vsub.f32 %v378, %v434
        %v445 = vsub.f32 %v380, %v436
        %v446 = vsub.f32 %v382, %v438
        %s447 = sld [smem:[#allocation2]]
        %v448 = vmul.f32 %v439, %v277
        %v449 = vmul.f32 %v440, %v278
        %v450 = vmul.f32 %v441, %v279
        %v451 = vmul.f32 %v442, %v280
        %v452 = vmul.f32 %v443, %v281
        %v453 = vmul.f32 %v444, %v282
        %v454 = vmul.f32 %v445, %v283
        %v455 = vmul.f32 %v446, %v284
        %vm456 = vcmask 7168
        %v457 = vsel %vm456, %v448, 0.0
        %v458 = vsel %vm456, %v449, 0.0
        %v459 = vadd.f32 %v457, %v458
        %v460 = vsel %vm456, %v450, 0.0
        %v461 = vadd.f32 %v459, %v460
        %v462 = vsel %vm456, %v451, 0.0
        %v463 = vadd.f32 %v461, %v462
        %v464 = vsel %vm456, %v452, 0.0
        %v465 = vadd.f32 %v463, %v464
        %v466 = vsel %vm456, %v453, 0.0
        %v467 = vadd.f32 %v465, %v466
        %v468 = vsel %vm456, %v454, 0.0
        %v469 = vadd.f32 %v467, %v468
        %v470 = vsel %vm456, %v455, 0.0
        %v471 = vadd.f32 %v469, %v470
        %472 = vadd.xlane.f32.xlu0 %v471
        %v473 = vpop.xlane.xlu0 %472
        %v474 = vrot.slane %v473, 4
        %v475 = vadd.f32 %v473, %v474
        %v476 = vrot.slane %v475, 2
        %v477 = vadd.f32 %v475, %v476
        %v478 = vrot.slane %v477, 1
        %v479 = vadd.f32 %v477, %v478
        %s480 = vtos %v479
        %s481 = sadd.f32 %s447, %s480
        %s482 = scalar_lea.smem [#allocation2], 0
        %483 = sst [smem:[%s482]] %s481
        %vm484 = vcmp.eq.f32.partialorder %v226, %v288
        %vm485 = vcmp.eq.f32.partialorder %v227, %v290
        %vm486 = vcmp.eq.f32.partialorder %v228, %v292
        %vm487 = vcmp.eq.f32.partialorder %v229, %v294
        %vm488 = vcmp.eq.f32.partialorder %v230, %v296
        %vm489 = vcmp.eq.f32.partialorder %v231, %v298
        %vm490 = vcmp.eq.f32.partialorder %v232, %v300
        %vm491 = vcmp.eq.f32.partialorder %v233, %v302
        %v492 = vsel %vm484, %v286, 128
        %v493 = vsel %vm485, %v286, 128
        %v494 = vsel %vm486, %v286, 128
        %v495 = vsel %vm487, %v286, 128
        %v496 = vsel %vm488, %v286, 128
        %v497 = vsel %vm489, %v286, 128
        %v498 = vsel %vm490, %v286, 128
        %v499 = vsel %vm491, %v286, 128
        %v500 = vand.u32 %v492, 65535
        %v501 = vshra.s32 %v492, 16
        %v502 = vcvt.s32.f32 %v500
        %v503 = vcvt.s32.f32 %v501
        %504 = vmin.xlane.f32.xlu0 %v503
        %v505 = vpop.xlane.xlu0 %504
        %vm506 = vcmp.eq.f32.partialorder %v503, %v505
        %v507 = vsel %vm506, %v502, inf
        %508 = vmin.xlane.f32.xlu0 %v507
        %v509 = vpop.xlane.xlu0 %508
        %v510 = vcvt.f32.s32 %v509
        %v511 = vcvt.f32.s32 %v505
        %v512 = vshll.u32 %v511, 16
        %v513 = vadd.s32 %v512, %v510
        %v514 = vand.u32 %v493, 65535
        %v515 = vshra.s32 %v493, 16
        %v516 = vcvt.s32.f32 %v514
        %v517 = vcvt.s32.f32 %v515
        %518 = vmin.xlane.f32.xlu0 %v517
        %v519 = vpop.xlane.xlu0 %518
        %vm520 = vcmp.eq.f32.partialorder %v517, %v519
        %v521 = vsel %vm520, %v516, inf
        %522 = vmin.xlane.f32.xlu0 %v521
        %v523 = vpop.xlane.xlu0 %522
        %v524 = vcvt.f32.s32 %v523
        %v525 = vcvt.f32.s32 %v519
        %v526 = vshll.u32 %v525, 16
        %v527 = vadd.s32 %v526, %v524
        %v528 = vand.u32 %v494, 65535
        %v529 = vshra.s32 %v494, 16
        %v530 = vcvt.s32.f32 %v528
        %v531 = vcvt.s32.f32 %v529
        %532 = vmin.xlane.f32.xlu0 %v531
        %v533 = vpop.xlane.xlu0 %532
        %vm534 = vcmp.eq.f32.partialorder %v531, %v533
        %v535 = vsel %vm534, %v530, inf
        %536 = vmin.xlane.f32.xlu0 %v535
        %v537 = vpop.xlane.xlu0 %536
        %v538 = vcvt.f32.s32 %v537
        %v539 = vcvt.f32.s32 %v533
        %v540 = vshll.u32 %v539, 16
        %v541 = vadd.s32 %v540, %v538
        %v542 = vand.u32 %v495, 65535
        %v543 = vshra.s32 %v495, 16
        %v544 = vcvt.s32.f32 %v542
        %v545 = vcvt.s32.f32 %v543
        %546 = vmin.xlane.f32.xlu0 %v545
        %v547 = vpop.xlane.xlu0 %546
        %vm548 = vcmp.eq.f32.partialorder %v545, %v547
        %v549 = vsel %vm548, %v544, inf
        %550 = vmin.xlane.f32.xlu0 %v549
        %v551 = vpop.xlane.xlu0 %550
        %v552 = vcvt.f32.s32 %v551
        %v553 = vcvt.f32.s32 %v547
        %v554 = vshll.u32 %v553, 16
        %v555 = vadd.s32 %v554, %v552
        %v556 = vand.u32 %v496, 65535
        %v557 = vshra.s32 %v496, 16
        %v558 = vcvt.s32.f32 %v556
        %v559 = vcvt.s32.f32 %v557
        %560 = vmin.xlane.f32.xlu0 %v559
        %v561 = vpop.xlane.xlu0 %560
        %vm562 = vcmp.eq.f32.partialorder %v559, %v561
        %v563 = vsel %vm562, %v558, inf
        %564 = vmin.xlane.f32.xlu0 %v563
        %v565 = vpop.xlane.xlu0 %564
        %v566 = vcvt.f32.s32 %v565
        %v567 = vcvt.f32.s32 %v561
        %v568 = vshll.u32 %v567, 16
        %v569 = vadd.s32 %v568, %v566
        %v570 = vand.u32 %v497, 65535
        %v571 = vshra.s32 %v497, 16
        %v572 = vcvt.s32.f32 %v570
        %v573 = vcvt.s32.f32 %v571
        %574 = vmin.xlane.f32.xlu0 %v573
        %v575 = vpop.xlane.xlu0 %574
        %vm576 = vcmp.eq.f32.partialorder %v573, %v575
        %v577 = vsel %vm576, %v572, inf
        %578 = vmin.xlane.f32.xlu0 %v577
        %v579 = vpop.xlane.xlu0 %578
        %v580 = vcvt.f32.s32 %v579
        %v581 = vcvt.f32.s32 %v575
        %v582 = vshll.u32 %v581, 16
        %v583 = vadd.s32 %v582, %v580
        %v584 = vand.u32 %v498, 65535
        %v585 = vshra.s32 %v498, 16
        %v586 = vcvt.s32.f32 %v584
        %v587 = vcvt.s32.f32 %v585
        %588 = vmin.xlane.f32.xlu0 %v587
        %v589 = vpop.xlane.xlu0 %588
        %vm590 = vcmp.eq.f32.partialorder %v587, %v589
        %v591 = vsel %vm590, %v586, inf
        %592 = vmin.xlane.f32.xlu0 %v591
        %v593 = vpop.xlane.xlu0 %592
        %v594 = vcvt.f32.s32 %v593
        %v595 = vcvt.f32.s32 %v589
        %v596 = vshll.u32 %v595, 16
        %v597 = vadd.s32 %v596, %v594
        %v598 = vand.u32 %v499, 65535
        %v599 = vshra.s32 %v499, 16
        %v600 = vcvt.s32.f32 %v598
        %v601 = vcvt.s32.f32 %v599
        %602 = vmin.xlane.f32.xlu0 %v601
        %v603 = vpop.xlane.xlu0 %602
        %vm604 = vcmp.eq.f32.partialorder %v601, %v603
        %v605 = vsel %vm604, %v600, inf
        %606 = vmin.xlane.f32.xlu0 %v605
        %v607 = vpop.xlane.xlu0 %606
        %v608 = vcvt.f32.s32 %v607
        %v609 = vcvt.f32.s32 %v603
        %v610 = vshll.u32 %v609, 16
        %v611 = vadd.s32 %v610, %v608
        %s612 = sld [smem:[#allocation3]]
        %vm613 = vcmp.eq.s32.totalorder %v513, %v234
        %vm614 = vcmp.eq.s32.totalorder %v527, %v235
        %vm615 = vcmp.eq.s32.totalorder %v541, %v236
        %vm616 = vcmp.eq.s32.totalorder %v555, %v237
        %vm617 = vcmp.eq.s32.totalorder %v569, %v238
        %vm618 = vcmp.eq.s32.totalorder %v583, %v239
        %vm619 = vcmp.eq.s32.totalorder %v597, %v240
        %vm620 = vcmp.eq.s32.totalorder %v611, %v241
        %vm621 = vmand %vm613, %vm261
        %vm622 = vmand %vm614, %vm262
        %vm623 = vmand %vm615, %vm263
        %vm624 = vmand %vm616, %vm264
        %vm625 = vmand %vm617, %vm265
        %vm626 = vmand %vm618, %vm266
        %vm627 = vmand %vm619, %vm267
        %vm628 = vmand %vm620, %vm268
        %v629 = vsel %vm621, 1.0, 0.0
        %v630 = vsel %vm622, 1.0, 0.0
        %v631 = vsel %vm623, 1.0, 0.0
        %v632 = vsel %vm624, 1.0, 0.0
        %v633 = vsel %vm625, 1.0, 0.0
        %v634 = vsel %vm626, 1.0, 0.0
        %v635 = vsel %vm627, 1.0, 0.0
        %v636 = vsel %vm628, 1.0, 0.0
        %v637 = vsel %vm456, %v629, 0.0
        %v638 = vsel %vm456, %v630, 0.0
        %v639 = vadd.f32 %v637, %v638
        %v640 = vsel %vm456, %v631, 0.0
        %v641 = vadd.f32 %v639, %v640
        %v642 = vsel %vm456, %v632, 0.0
        %v643 = vadd.f32 %v641, %v642
        %v644 = vsel %vm456, %v633, 0.0
        %v645 = vadd.f32 %v643, %v644
        %v646 = vsel %vm456, %v634, 0.0
        %v647 = vadd.f32 %v645, %v646
        %v648 = vsel %vm456, %v635, 0.0
        %v649 = vadd.f32 %v647, %v648
        %v650 = vsel %vm456, %v636, 0.0
        %v651 = vadd.f32 %v649, %v650
        %652 = vadd.xlane.f32.xlu0 %v651
        %v653 = vpop.xlane.xlu0 %652
        %v654 = vrot.slane %v653, 4
        %v655 = vadd.f32 %v653, %v654
        %v656 = vrot.slane %v655, 2
        %v657 = vadd.f32 %v655, %v656
        %v658 = vrot.slane %v657, 1
        %v659 = vadd.f32 %v657, %v658
        %s660 = vtos %v659
        %s661 = sadd.f32 %s612, %s660
        %s662 = scalar_lea.smem [#allocation3], 0
        %663 = sst [smem:[%s662]] %s661
        %p664 = scmp.eq.s32.totalorder %s21, 3
        // Predicated region
        $region33: #{tpu_custom_call.1} parent=27 // pred_check
          %p665 = pneg %p664
        $region34: #{tpu_custom_call.1} parent=27 // pred_check_branch
          %667 = sbr.rel (%p665) target = $region36
        $region35: #{tpu_custom_call.1} parent=27 // pred_region
          %s668 = sld [smem:[#allocation2]]
          %s669 = smul.f32 %s668, 0.005
          %s670 = scalar_lea.smem [#allocation7], 0
          %671 = sst [smem:[%s670]] %s669
          %s672 = sld [smem:[#allocation3]]
          %s673 = scalar_lea.smem [#allocation8], 0
          %674 = sst [smem:[%s673]] %s672
        $region36: #{tpu_custom_call.1} parent=27 // pred_fallthru
          _
        %s675 = sand.u32 %s81, 1
        %s676 = scalar_lea.sflag [#allocation5], %s675
        %s677 = sand.u32 %s81, 1
        %s678 = smul.addr %s677, 64
        %s679 = scalar_lea.vmem [#allocation4], %s678
        // Predicated region
        $region37: #{tpu_custom_call.1} parent=27 // pred_check
          %p680 = pneg %p91
        $region38: #{tpu_custom_call.1} parent=27 // pred_check_branch
          %682 = sbr.rel (%p680) target = $region40
        $region39: #{tpu_custom_call.1} parent=27 // pred_region
          %s683 = smul.u32 8, %s21
          %s685 = ssub.s32 1024, 1024
          %686 = vsyncadd %s676, %s685
          %s687 = smul.addr %s683, 128
          %s688 = scalar_lea.hbm %s2, %s687
          %s689 = sshll.u32 %s679, 4
          %s690 = int_to_ptr.vmem [resolvable:$true] %s689
          %695 = dma.vmem_to_hbm [thread:$0]  %s690, 1024, %s688, %s676, 128, 128, 8
        $region40: #{tpu_custom_call.1} parent=27 // pred_fallthru
          _
        // Predicated region
        $region41: #{tpu_custom_call.1} parent=27 // pred_check
          %p696 = pneg %p112
        $region42: #{tpu_custom_call.1} parent=27 // pred_check_branch
          %698 = sbr.rel (%p696) target = $region44
        $region43: #{tpu_custom_call.1} parent=27 // pred_region
          %s700 = ssub.s32 16, 16
          %701 = vsyncadd [#allocation6], %s700
          %704 = dma.smem_to_hbm [#allocation7], 16, %s3, [#allocation6]
        $region44: #{tpu_custom_call.1} parent=27 // pred_fallthru
          _
        // Predicated region
        $region45: #{tpu_custom_call.1} parent=27 // pred_check
          %p705 = pneg %p133
        $region46: #{tpu_custom_call.1} parent=27 // pred_check_branch
          %707 = sbr.rel (%p705) target = $region48
        $region47: #{tpu_custom_call.1} parent=27 // pred_region
          %s709 = ssub.s32 16, 16
          %710 = vsyncadd [#allocation9], %s709
          %713 = dma.smem_to_hbm [#allocation8], 16, %s4, [#allocation9]
        $region48: #{tpu_custom_call.1} parent=27 // pred_fallthru
          _
        // Predicated region
        $region49: #{tpu_custom_call.1} parent=27 // pred_check
          %p714 = pneg %p112
        $region50: #{tpu_custom_call.1} parent=27 // pred_check_branch
          %716 = sbr.rel (%p714) target = $region52
        $region51: #{tpu_custom_call.1} parent=27 // pred_region
          %717 = dma.done [#allocation6], 16
        $region52: #{tpu_custom_call.1} parent=27 // pred_fallthru
          _
        // Predicated region
        $region53: #{tpu_custom_call.1} parent=27 // pred_check
          %p718 = pneg %p133
        $region54: #{tpu_custom_call.1} parent=27 // pred_check_branch
          %720 = sbr.rel (%p718) target = $region56
        $region55: #{tpu_custom_call.1} parent=27 // pred_region
          %721 = dma.done [#allocation9], 16
        $region56: #{tpu_custom_call.1} parent=27 // pred_fallthru
          _
        %722 = sfence
      $region28: #{tpu_custom_call.1} parent=5 // pred_fallthru
        _
      %p723 = scmp.le.s32.totalorder 2, %s16
      // Predicated region
      $region57: #{tpu_custom_call.1} parent=5 // pred_check
        %p724 = pneg %p723
      $region58: #{tpu_custom_call.1} parent=5 // pred_check_branch
        %726 = sbr.rel (%p724) target = $region60
      $region59: #{tpu_custom_call.1} parent=5 // pred_region
        %s727 = ssub.s32 %s16, 2
        // Predicated region
        $region61: #{tpu_custom_call.1} parent=59 // pred_check
          %p728 = pneg %p97
        $region62: #{tpu_custom_call.1} parent=59 // pred_check_branch
          %730 = sbr.rel (%p728) target = $region64
        $region63: #{tpu_custom_call.1} parent=59 // pred_region
          %s731 = sand.u32 %s82, 1
          %s732 = scalar_lea.sflag [#allocation5], %s731
          %s733 = sand.u32 %s82, 1
          %s734 = smul.addr %s733, 64
          %s735 = scalar_lea.vmem [#allocation4], %s734
          %736 = dma.done %s732, 1024
        $region64: #{tpu_custom_call.1} parent=59 // pred_fallthru
          _
      $region60: #{tpu_custom_call.1} parent=5 // pred_fallthru
        _
    $region6: #{tpu_custom_call.1} parent=1 // loop_footer
      %s20 = sadd.s32 1, %s16
    $region7: #{tpu_custom_call.1} parent=1 // loop_footer_branch
      %15 = sbr.rel target = $region3
    $region8: #{tpu_custom_call.1} parent=1 // loop_exit
      _
    %737 = vsyncpa [#allocation5], 1
    %s738 = scalar_lea.sflag [#allocation5], 1
    %739 = vsyncpa %s738, 1
    %740 = vsyncpa [#allocation6], 1
    %s741 = scalar_lea.sflag [#allocation6], 1
    %742 = vsyncpa %s741, 1
    %743 = vsyncpa [#allocation9], 1

</llo_original>
